<compile_context>
chip_gen: v5e
topology: v5e:2x2
jax: 0.10.0
libtpu: 0.0.40
codegen_flags: <defaults>
</compile_context>

<pallas_src>
import math
import numpy as np
import jax
import jax.numpy as jnp
from jax import lax
from jax.experimental import pallas as pl
from jax.experimental.pallas import tpu as pltpu


# ----------------------------------------------------------------------------
# Pallas kernel: WbdT (resident) @ patch tile -> lane-dense channel-major store
# ----------------------------------------------------------------------------
def _wavelet_kernel(a_ref, w_ref, o_ref):
    # a_ref: (bn, K, tm) bf16   w_ref: (F, K) bf16   o_ref: (bn, F, tm)
    # Cast to f32 in VMEM: keeps HBM traffic at bf16 width while the dot is
    # F32 x F32 = F32 (f32 accumulation; also required by the interpret/CPU
    # backend which rejects BF16 x BF16 = F32).
    w = w_ref[...].astype(jnp.float32)                      # hoisted, (F, K)
    for b in range(a_ref.shape[0]):                         # static unroll, bn small
        o_ref[b] = jnp.dot(
            w, a_ref[b].astype(jnp.float32),
            preferred_element_type=jnp.float32,
        ).astype(o_ref.dtype)                               # lane-dense (F, tm) store


def _select_tiles(N, M, tile_m):
    """Pick (batch_block, patch_tile) sizes: 128-aligned lane dim, small-M
    batching, and >= 2 grid steps when possible (v7x has 2 TensorCores)."""
    tile_m = max(128, int(tile_m))
    if M <= tile_m:
        tm = M                                   # full-extent block: always legal
        bn = max(1, min(N, tile_m // max(M, 1)))  # small-M path: batch images
        if N >= 2:
            bn = max(1, min(bn, N // 2))         # keep >= 2 grid steps
        while N % bn:                            # avoid ragged batch blocks
            bn -= 1
        # single-image whole-M case: split M so both v7x cores get work
        if N == 1 and M >= 256:
            tm = max(128, ((M // 2) // 128) * 128)
    else:
        tm = (tile_m // 128) * 128               # lane dim must be 128-aligned
        bn = 1
    return bn, tm


def _wavelet_matmul(patches, wbd_t, *, tile_m=4096, out_dtype=jnp.float32):
    """patches: [N, K, M], wbd_t: [F, K]  ->  [N, F, M] (channel-major)."""
    N, K, M = patches.shape
    F, Kw = wbd_t.shape
    assert K == Kw

    bn, tm = _select_tiles(N, M, tile_m)
    grid = (pl.cdiv(N, bn), pl.cdiv(M, tm))      # ragged final M tile is masked

    cost = pl.CostEstimate(
        flops=2 * N * M * K * F,
        transcendentals=0,
        bytes_accessed=(patches.size * patches.dtype.itemsize
                        + wbd_t.size * wbd_t.dtype.itemsize
                        + N * F * M * jnp.dtype(out_dtype).itemsize),
    )

    return pl.pallas_call(
        _wavelet_kernel,
        out_shape=jax.ShapeDtypeStruct((N, F, M), out_dtype),
        grid_spec=pltpu.PrefetchScalarGridSpec(
            num_scalar_prefetch=0,
            grid=grid,
            in_specs=[
                pl.BlockSpec((bn, K, tm), lambda n, i: (n, 0, i)),  # patch tile
                pl.BlockSpec((F, K), lambda n, i: (0, 0)),          # weight, resident
            ],
            out_specs=pl.BlockSpec((bn, F, tm), lambda n, i: (n, 0, i)),
        ),
        compiler_params=pltpu.CompilerParams(
            # Only matters on v7x (2 TCs); harmless documentation on v5e/v6e.
            dimension_semantics=("parallel", "parallel"),
        ),
        cost_estimate=cost,
    )(patches, wbd_t)


# ----------------------------------------------------------------------------
# WaveletTransform forward (dec=True, transpose=True)
# ----------------------------------------------------------------------------
class WaveletTransformPallas:
    def __init__(self, scale=2, dec=True, transpose=True,
                 compute_dtype=jnp.bfloat16, out_dtype=jnp.float32,
                 tile_m=4096, key=jax.random.PRNGKey(0)):
        assert dec, "only the dec=True (analysis) branch is implemented"
        # TODO(synk): dec=False (grouped ConvTranspose2d) branch not implemented.
        self.scale = scale
        self.dec = dec
        self.transpose = transpose
        self.compute_dtype = compute_dtype   # HBM patch/weight stream dtype
        self.out_dtype = out_dtype           # bf16 allowed if consumer tolerates it
        self.tile_m = tile_m
        self.C = 16
        self.ks = int(math.pow(2, scale))
        self.nc = 3 * self.ks * self.ks
        assert self.nc % self.C == 0, (
            "out_channels must be divisible by groups=16 (the scale=1 default "
            "is invalid in PyTorch too); use scale=2."
        )
        self.out_per_group = self.nc // self.C
        # Conv2d weight: [out_channels, in_channels/groups, ks, ks] = [nc, 1, ks, ks]
        self.weight = jax.random.normal(
            key, (self.nc, 1, self.ks, self.ks), dtype=jnp.float32
        )
        wbd = self._build_block_diag_weight(np.asarray(self.weight))
        # Transposed (F, K) so the kernel's MXU result is lane-dense (F, tm).
        self._wbd_t = jnp.asarray(wbd.T).astype(self.compute_dtype)

    def _build_block_diag_weight(self, w_np):
        """Block-diagonal grouped-conv weight with the module's post-conv
        channel permutation (view(3,-1).transpose(1,2)) folded into columns."""
        C, ks, nc, opg = self.C, self.ks, self.nc, self.out_per_group
        third = nc // 3                       # the '-1' dim in view(N, 3, -1, H', W')
        wbd = np.zeros((C * ks * ks, nc), dtype=np.float32)
        for o in range(nc):                   # conv output channel (grouped order)
            g = o // opg                      # input channel / group index
            a, b = o // third, o % third      # view(3, third) indices
            f = b * 3 + a                     # final channel after transpose(1, 2)
            wbd[g * ks * ks:(g + 1) * ks * ks, f] = w_np[o, 0].reshape(-1)
        return wbd

    def __call__(self, x):
        """x: [N, 16, H, W] (NCHW, as in PyTorch) -> [N, nc, H/ks, W/ks]."""
        N, C, H, W = x.shape
        ks, nc = self.ks, self.nc
        assert C == self.C and H % ks == 0 and W % ks == 0
        Ho, Wo = H // ks, W // ks
        M = Ho * Wo

        # space-to-depth / im2col in [N, K, M] layout: one XLA relayout pass
        # fused with the cast to the half-width compute dtype.
        patches = (
            x.astype(self.compute_dtype)
             .reshape(N, C, Ho, ks, Wo, ks)
             .transpose(0, 1, 3, 5, 2, 4)          # (N, C, ks, ks, Ho, Wo)
             .reshape(N, C * ks * ks, M)
        )

        out = _wavelet_matmul(patches, self._wbd_t,
                              tile_m=self.tile_m, out_dtype=self.out_dtype)
        # Kernel output is already channel-major: NCHW is a free reshape.
        return out.reshape(N, nc, Ho, Wo)


# ----------------------------------------------------------------------------
# Pure-JAX reference (grouped conv + the module's channel-shuffle step).
# Conv is computed in f32 (CPU/interpret-safe); operand_dtype only controls
# the bf16 rounding of the operands, matching the kernel's input rounding.
# ----------------------------------------------------------------------------
def _reference(x, weight, ks, C, operand_dtype=jnp.float32):
    xq = x.astype(operand_dtype).astype(jnp.float32)
    wq = weight.astype(operand_dtype).astype(jnp.float32)
    conv = lax.conv_general_dilated(
        xq, wq,
        window_strides=(ks, ks), padding="VALID",
        dimension_numbers=("NCHW", "OIHW", "NCHW"),
        feature_group_count=C,
        precision=lax.Precision.HIGHEST,
    )
    n, nc, ho, wo = conv.shape
    return (conv.reshape(n, 3, nc // 3, ho, wo)
                .transpose(0, 2, 1, 3, 4)
                .reshape(n, nc, ho, wo))


if __name__ == "__main__":
    key = jax.random.PRNGKey(0)
    k_w, k_x = jax.random.split(key)

    model = WaveletTransformPallas(scale=2, dec=True, transpose=True, key=k_w)

    # Small deterministic input: N=2, C=16 (fixed by the module), H=W=32.
    x = jax.random.normal(k_x, (2, 16, 32, 32), dtype=jnp.float32)

    out = jax.block_until_ready(model(x))
    assert out.shape == (2, 48, 8, 8), out.shape

    # 1) Matched-rounding reference (operands rounded to bf16, f32 accumulation):
    #    validates the kernel math / weight permutation / channel shuffle.
    ref_matched = _reference(x, model.weight, model.ks, model.C,
                             operand_dtype=jnp.bfloat16)
    np.testing.assert_allclose(np.asarray(out), np.asarray(ref_matched),
                               rtol=2e-2, atol=2e-2)

    # 2) Full-f32 reference: the bf16 operand stream stays close to the
    #    original float32 module semantics.
    ref_f32 = _reference(x, model.weight, model.ks, model.C,
                         operand_dtype=jnp.float32)
    np.testing.assert_allclose(np.asarray(out), np.asarray(ref_f32),
                               rtol=5e-2, atol=3e-1)

    print("KERNEL_OK")
</pallas_src>

<mosaic_0001>
module attributes {stable_mosaic.version = 11 : i64} {
  func.func @_wavelet_kernel(%arg0: i32, %arg1: i32, %arg2: memref<1x256x64xbf16, #tpu.memory_space<vmem>>, %arg3: memref<48x256xbf16, #tpu.memory_space<vmem>>, %arg4: memref<1x48x64xf32, #tpu.memory_space<vmem>>) attributes {dimension_semantics = [#tpu.dimension_semantics<parallel>, #tpu.dimension_semantics<parallel>], iteration_bounds = array<i64: 2, 1>, scalar_prefetch = 0 : i64, scratch_operands = 0 : i64, tpu.core_type = #tpu.core_type<tc>, window_params = [{transform_indices = @transform_0, window_bounds = array<i64: 1, 256, 64>}, {pipeline_mode = #tpu.pipeline_mode<synchronous>, transform_indices = @transform_1, window_bounds = array<i64: 48, 256>}, {transform_indices = @transform_2, window_bounds = array<i64: 1, 48, 64>}]} {
    %c0 = arith.constant 0 : index
    %c0_0 = arith.constant 0 : index
    %0 = vector.load %arg3[%c0, %c0_0] : memref<48x256xbf16, #tpu.memory_space<vmem>>, vector<48x256xbf16>
    %1 = arith.extf %0 : vector<48x256xbf16> to vector<48x256xf32>
    %c0_1 = arith.constant 0 : index
    %c0_2 = arith.constant 0 : index
    %c0_3 = arith.constant 0 : index
    %2 = vector.load %arg2[%c0_1, %c0_2, %c0_3] : memref<1x256x64xbf16, #tpu.memory_space<vmem>>, vector<1x256x64xbf16>
    %3 = vector.shape_cast %2 : vector<1x256x64xbf16> to vector<256x64xbf16>
    %4 = arith.extf %3 : vector<256x64xbf16> to vector<256x64xf32>
    %cst = arith.constant dense<0.000000e+00> : vector<48x64xf32>
    %5 = tpu.matmul %1, %4, %cst {dimension_numbers = #tpu.dot_dimension_numbers<[1], [0], [0], [1], [0, 0, 1, 1], [], []>} : vector<48x256xf32>, vector<256x64xf32>, vector<48x64xf32> -> vector<48x64xf32>
    %c0_4 = arith.constant 0 : index
    %c0_5 = arith.constant 0 : index
    %c0_6 = arith.constant 0 : index
    %6 = vector.load %arg4[%c0_4, %c0_5, %c0_6] : memref<1x48x64xf32, #tpu.memory_space<vmem>>, vector<1x48x64xf32>
    %7 = vector.shape_cast %6 : vector<1x48x64xf32> to vector<48x64xf32>
    %8 = vector.shape_cast %5 : vector<48x64xf32> to vector<1x48x64xf32>
    tpu.vector_store %arg4[%c0_4, %c0_5, %c0_6], %8 {strides = array<i32>} : memref<1x48x64xf32, #tpu.memory_space<vmem>>, vector<1x48x64xf32>,
    return
  }
  func.func @transform_0(%arg0: i32, %arg1: i32) -> (i32, i32, i32) {
    %c0_i32 = arith.constant 0 : i32
    %c0_i32_0 = arith.constant 0 : i32
    return %arg0, %c0_i32, %arg1 : i32, i32, i32
  }
  func.func @transform_1(%arg0: i32, %arg1: i32) -> (i32, i32) {
    %c0_i32 = arith.constant 0 : i32
    %c0_i32_0 = arith.constant 0 : i32
    %c0_i32_1 = arith.constant 0 : i32
    return %c0_i32, %c0_i32_0 : i32, i32
  }
  func.func @transform_2(%arg0: i32, %arg1: i32) -> (i32, i32, i32) {
    %c0_i32 = arith.constant 0 : i32
    %c0_i32_0 = arith.constant 0 : i32
    return %arg0, %c0_i32, %arg1 : i32, i32, i32
  }
}

</mosaic_0001>

<llo_original>
// kernel: tpu_custom_call.1
$region0: #{tpu_custom_call.1}
  #allocation0 [shape = 'u32[]', space=smem, size = 0x4, offset = 0x4, fixed_abs, tag = 'smem constant byte address 0x4 - core index']
  #allocation1 [shape = 'u32[72,128]{1,0:T(1,128)}', space=vmem, size = 0x9000, scoped, tag = 'internal scratch']
  %s0 = inlined_call_operand.vmem [shape: bf16[2,256,64], index: 0, kind: input, shape index: {}]
  %s1 = inlined_call_operand.vmem [shape: bf16[48,256], index: 1, kind: input, shape index: {}]
  %s2 = inlined_call_operand.hbm [shape: f32[2,48,64], index: 2, kind: output, shape index: {}]
  %s3 = sld [smem:[#allocation0]]
  $region41: #{tpu_custom_call.1} parent=0
    _
  %s5 = ssub.s32 1, %s3
  %s6 = scalar_select 0, %s5, %s3
  $region1: #{tpu_custom_call.1} parent=0
    #allocation2 [shape = 'u8[49152]{0}', space=vmem, size = 0xc000, scoped, tag = 'output window, operand 0']
    #allocation3 [shape = 's32[2]{0}', space=sflag, size = 0x8, scoped, tag = 'scoped memory for tpu_custom_call.1']
    %7 = vsyncpa [#allocation3], 0
    %s8 = scalar_lea.sflag [#allocation3], 1
    %9 = vsyncpa %s8, 0
    loop: start=0, step=1, limit=4
    $region2: #{tpu_custom_call.1} parent=1 // loop_pre_header
      _
    $region3: #{tpu_custom_call.1} parent=1 // loop_header
      %s11 = sphi 0, %s15
      %p12 = scmp.ge.s32.totalorder %s11, 4
      %s18 = sphi 0, %s30
      %s19 = sphi 0, %s26
      %s20 = sphi 0, %s18
      %s21 = sphi 0, %s19
      %s22 = sphi 0, %s20
      %s23 = sphi 0, %s21
      %s35 = sphi 0, %s37
      %s38 = sphi 0, %s35
      %s39 = sphi 0, %s38
      %s55 = sphi 0, %s39
      %s59 = sphi 0, %s59
      %s61 = sphi 0, %s59
      %s62 = sphi 0, %s61
      %s76 = sphi 0, %s62
      %s84 = sphi 0, %s86
      %s87 = sphi 0, %s84
      %s88 = sphi 0, %s87
      %s104 = sphi 0, %s88
    $region4: #{tpu_custom_call.1} parent=1 // loop_header_branch
      %14 = sbr.rel (%p12) target = $region8
    $region5: #{tpu_custom_call.1} parent=1 // loop_body
      %s16 = ssub.s32 %s11, 1
      %s17 = ssub.s32 %s11, 2
      %s24 = sadd.s32 1, %s19
      %p25 = scmp.ge.s32.totalorder %s24, 1
      %s26 = scalar_select %p25, 0, %s24
      %s27 = sadd.s32 1, %s18
      %s28 = scalar_select %p25, %s27, %s18
      %p29 = scmp.ge.s32.totalorder %s28, 2
      %s30 = scalar_select %p29, 0, %s28
      %s31 = ssub.s32 %s18, %s30
      %s32 = ssub.s32 %s19, %s26
      %s33 = sor.u32 %s31, %s32
      %p34 = scmp.eq.s32.totalorder %s33, 0
      %s36 = sadd.s32 %s35, 1
      %s37 = scalar_select %p34, %s35, %s36
      %p40 = pneg %p34
      %p41 = scmp.eq.s32.totalorder %s11, 1
      %p42 = por %p40, %p41
      %p43 = scmp.ne.s32.totalorder %s35, %s38
      %p44 = scmp.eq.s32.totalorder %s11, 0
      %p45 = por %p43, %p44
      %p46 = scmp.ne.s32.totalorder %s35, %s38
      %p47 = scmp.eq.s32.totalorder %s16, 1
      %p48 = por %p46, %p47
      %p49 = scmp.ne.s32.totalorder %s38, %s39
      %p50 = scmp.eq.s32.totalorder %s16, 0
      %p51 = por %p49, %p50
      %p52 = scmp.ne.s32.totalorder %s38, %s39
      %p53 = scmp.eq.s32.totalorder %s17, 1
      %p54 = por %p52, %p53
      %p56 = scmp.ne.s32.totalorder %s39, %s55
      %p57 = scmp.eq.s32.totalorder %s17, 0
      %p58 = por %p56, %p57
      %s60 = sadd.s32 %s59, 1
      %p63 = scmp.eq.s32.totalorder %s11, 1
      %p64 = scmp.ne.s32.totalorder %s59, %s61
      %p65 = scmp.eq.s32.totalorder %s11, 0
      %p66 = por %p64, %p65
      %p67 = scmp.ne.s32.totalorder %s59, %s61
      %p68 = scmp.eq.s32.totalorder %s16, 1
      %p69 = por %p67, %p68
      %p70 = scmp.ne.s32.totalorder %s61, %s62
      %p71 = scmp.eq.s32.totalorder %s16, 0
      %p72 = por %p70, %p71
      %p73 = scmp.ne.s32.totalorder %s61, %s62
      %p74 = scmp.eq.s32.totalorder %s17, 1
      %p75 = por %p73, %p74
      %p77 = scmp.ne.s32.totalorder %s62, %s76
      %p78 = scmp.eq.s32.totalorder %s17, 0
      %p79 = por %p77, %p78
      %s80 = ssub.s32 %s18, %s30
      %s81 = ssub.s32 %s19, %s26
      %s82 = sor.u32 %s80, %s81
      %p83 = scmp.eq.s32.totalorder %s82, 0
      %s85 = sadd.s32 %s84, 1
      %s86 = scalar_select %p83, %s84, %s85
      %p89 = pneg %p83
      %p90 = scmp.eq.s32.totalorder %s11, 1
      %p91 = por %p89, %p90
      %p92 = scmp.ne.s32.totalorder %s84, %s87
      %p93 = scmp.eq.s32.totalorder %s11, 0
      %p94 = por %p92, %p93
      %p95 = scmp.ne.s32.totalorder %s84, %s87
      %p96 = scmp.eq.s32.totalorder %s16, 1
      %p97 = por %p95, %p96
      %p98 = scmp.ne.s32.totalorder %s87, %s88
      %p99 = scmp.eq.s32.totalorder %s16, 0
      %p100 = por %p98, %p99
      %p101 = scmp.ne.s32.totalorder %s87, %s88
      %p102 = scmp.eq.s32.totalorder %s17, 1
      %p103 = por %p101, %p102
      %p105 = scmp.ne.s32.totalorder %s88, %s104
      %p106 = scmp.eq.s32.totalorder %s17, 0
      %p107 = por %p105, %p106
      %p108 = scmp.le.s32.totalorder 1, %s11
      %p109 = scmp.lt.s32.totalorder %s11, 3
      %p110 = pnand %p108, %p109
      %p111 = pneg %p110
      // Predicated region
      $region9: #{tpu_custom_call.1} parent=5 // pred_check
        _
      $region10: #{tpu_custom_call.1} parent=5 // pred_check_branch
        %113 = sbr.rel (%p110) target = $region12
      $region11: #{tpu_custom_call.1} parent=5 // pred_region
        %s114 = ssub.s32 %s11, 1
        // Predicated region
        $region13: #{tpu_custom_call.1} parent=11 // pred_check
          %p115 = pneg %p72
        $region14: #{tpu_custom_call.1} parent=11 // pred_check_branch
          %117 = sbr.rel (%p115) target = $region16
        $region15: #{tpu_custom_call.1} parent=11 // pred_region
          _
        $region16: #{tpu_custom_call.1} parent=11 // pred_fallthru
          _
      $region12: #{tpu_custom_call.1} parent=5 // pred_fallthru
        _
      %p118 = scmp.lt.s32.totalorder %s11, 2
      // Predicated region
      $region17: #{tpu_custom_call.1} parent=5 // pred_check
        %p119 = pneg %p118
      $region18: #{tpu_custom_call.1} parent=5 // pred_check_branch
        %121 = sbr.rel (%p119) target = $region20
      $region19: #{tpu_custom_call.1} parent=5 // pred_region
        // Predicated region
        $region21: #{tpu_custom_call.1} parent=19 // pred_check
          %p122 = pneg %p45
        $region22: #{tpu_custom_call.1} parent=19 // pred_check_branch
          %124 = sbr.rel (%p122) target = $region24
        $region23: #{tpu_custom_call.1} parent=19 // pred_region
          %p125 = scmp.lt.s32.totalorder %s18, 1
          %s126 = scalar_select %p125, %s18, 1
          %p127 = scmp.lt.s32.totalorder %s19, 0
          %s128 = scalar_select %p127, %s19, 0
          %s129 = smul.addr %s126, 32
          %s130 = sadd.s32 %s128, %s129
          %s131 = smul.addr %s130, 4
          %s132 = scalar_lea.vmem %s0, %s131
        $region24: #{tpu_custom_call.1} parent=19 // pred_fallthru
          _
      $region20: #{tpu_custom_call.1} parent=5 // pred_fallthru
        _
      %p133 = scmp.le.s32.totalorder 1, %s11
      %p134 = scmp.lt.s32.totalorder %s11, 3
      %p135 = pnand %p133, %p134
      %p136 = pneg %p135
      // Predicated region
      $region25: #{tpu_custom_call.1} parent=5 // pred_check
        _
      $region26: #{tpu_custom_call.1} parent=5 // pred_check_branch
        %138 = sbr.rel (%p135) target = $region28
      $region27: #{tpu_custom_call.1} parent=5 // pred_region
        %s139 = ssub.s32 %s11, 1
        %p140 = scmp.lt.s32.totalorder %s20, 1
        %s141 = scalar_select %p140, %s20, 1
        %p142 = scmp.lt.s32.totalorder %s21, 0
        %s143 = scalar_select %p142, %s21, 0
        %s144 = smul.addr %s141, 32
        %s145 = sadd.s32 %s143, %s144
        %s146 = smul.addr %s145, 4
        %s147 = scalar_lea.vmem %s0, %s146
        %p148 = pneg %p51
        %p149 = pneg %p48
        %p150 = pneg %p72
        %p151 = pneg %p69
        %p152 = pneg %p100
        %p153 = pneg %p97
        %s154 = sand.u32 %s87, 1
        %s155 = scalar_lea.sflag [#allocation3], %s154
        %s156 = sand.u32 %s87, 1
        %s157 = smul.addr %s156, 48
        %s158 = scalar_lea.vmem [#allocation2], %s157
        %p159 = scmp.lt.s32.totalorder %s20, 1
        %s160 = scalar_select %p159, %s20, 1
        %p161 = scmp.lt.s32.totalorder %s21, 0
        %s162 = scalar_select %p161, %s21, 0
        %s163 = smul.addr %s160, 32
        %s164 = sadd.s32 %s162, %s163
        %s165 = smul.addr %s164, 4
        %s166 = scalar_lea.vmem %s0, %s165
        %v167 = vld [vmem:[%s1] sm:$0xff]
        %v168 = vld [vmem:[%s1 + $0x8] sm:$0xff]
        %v169 = vld [vmem:[%s1 + $0x10] sm:$0xff]
        %v170 = vld [vmem:[%s1 + $0x18] sm:$0xff]
        %v171 = vld [vmem:[%s1 + $0x20] sm:$0xff]
        %v172 = vld [vmem:[%s1 + $0x28] sm:$0xff]
        %v173 = vunpack.c.l.bf16 %v167
        %v174 = vunpack.c.h.bf16 %v167
        %v175 = vunpack.c.l.bf16 %v168
        %v176 = vunpack.c.h.bf16 %v168
        %v177 = vunpack.c.l.bf16 %v169
        %v178 = vunpack.c.h.bf16 %v169
        %v179 = vunpack.c.l.bf16 %v170
        %v180 = vunpack.c.h.bf16 %v170
        %v181 = vunpack.c.l.bf16 %v171
        %v182 = vunpack.c.h.bf16 %v171
        %v183 = vunpack.c.l.bf16 %v172
        %v184 = vunpack.c.h.bf16 %v172
        %v185 = vld [vmem:[%s166] sm:$0xf]
        %v186 = vld [vmem:[%s166 + $0x4] sm:$0xf]
        %v187 = vld [vmem:[%s166 + $0x8] sm:$0xf]
        %v188 = vld [vmem:[%s166 + $0xc] sm:$0xf]
        %v189 = vld [vmem:[%s166 + $0x10] sm:$0xf]
        %v190 = vld [vmem:[%s166 + $0x14] sm:$0xf]
        %v191 = vld [vmem:[%s166 + $0x18] sm:$0xf]
        %v192 = vld [vmem:[%s166 + $0x1c] sm:$0xf]
        %v193 = vld [vmem:[%s166 + $0x20] sm:$0xf]
        %v194 = vld [vmem:[%s166 + $0x24] sm:$0xf]
        %v195 = vld [vmem:[%s166 + $0x28] sm:$0xf]
        %v196 = vld [vmem:[%s166 + $0x2c] sm:$0xf]
        %v197 = vld [vmem:[%s166 + $0x30] sm:$0xf]
        %v198 = vld [vmem:[%s166 + $0x34] sm:$0xf]
        %v199 = vld [vmem:[%s166 + $0x38] sm:$0xf]
        %v200 = vld [vmem:[%s166 + $0x3c] sm:$0xf]
        %v201 = vld [vmem:[%s166 + $0x40] sm:$0xf]
        %v202 = vld [vmem:[%s166 + $0x44] sm:$0xf]
        %v203 = vld [vmem:[%s166 + $0x48] sm:$0xf]
        %v204 = vld [vmem:[%s166 + $0x4c] sm:$0xf]
        %v205 = vld [vmem:[%s166 + $0x50] sm:$0xf]
        %v206 = vld [vmem:[%s166 + $0x54] sm:$0xf]
        %v207 = vld [vmem:[%s166 + $0x58] sm:$0xf]
        %v208 = vld [vmem:[%s166 + $0x5c] sm:$0xf]
        %v209 = vld [vmem:[%s166 + $0x60] sm:$0xf]
        %v210 = vld [vmem:[%s166 + $0x64] sm:$0xf]
        %v211 = vld [vmem:[%s166 + $0x68] sm:$0xf]
        %v212 = vld [vmem:[%s166 + $0x6c] sm:$0xf]
        %v213 = vld [vmem:[%s166 + $0x70] sm:$0xf]
        %v214 = vld [vmem:[%s166 + $0x74] sm:$0xf]
        %v215 = vld [vmem:[%s166 + $0x78] sm:$0xf]
        %v216 = vld [vmem:[%s166 + $0x7c] sm:$0xf]
        %v217 = vunpack.c.l.bf16 %v185
        %v218 = vunpack.c.l.bf16 %v186
        %v219 = vunpack.c.l.bf16 %v187
        %v220 = vunpack.c.l.bf16 %v188
        %v221 = vunpack.c.l.bf16 %v189
        %v222 = vunpack.c.l.bf16 %v190
        %v223 = vunpack.c.l.bf16 %v191
        %v224 = vunpack.c.l.bf16 %v192
        %v225 = vunpack.c.l.bf16 %v193
        %v226 = vunpack.c.l.bf16 %v194
        %v227 = vunpack.c.l.bf16 %v195
        %v228 = vunpack.c.l.bf16 %v196
        %v229 = vunpack.c.l.bf16 %v197
        %v230 = vunpack.c.l.bf16 %v198
        %v231 = vunpack.c.l.bf16 %v199
        %v232 = vunpack.c.l.bf16 %v200
        %v233 = vunpack.c.l.bf16 %v201
        %v234 = vunpack.c.l.bf16 %v202
        %v235 = vunpack.c.l.bf16 %v203
        %v236 = vunpack.c.l.bf16 %v204
        %v237 = vunpack.c.l.bf16 %v205
        %v238 = vunpack.c.l.bf16 %v206
        %v239 = vunpack.c.l.bf16 %v207
        %v240 = vunpack.c.l.bf16 %v208
        %v241 = vunpack.c.l.bf16 %v209
        %v242 = vunpack.c.l.bf16 %v210
        %v243 = vunpack.c.l.bf16 %v211
        %v244 = vunpack.c.l.bf16 %v212
        %v245 = vunpack.c.l.bf16 %v213
        %v246 = vunpack.c.l.bf16 %v214
        %v247 = vunpack.c.l.bf16 %v215
        %v248 = vunpack.c.l.bf16 %v216
        %249 = vmatpush.msra.mxu0 %v232
        %250 = vmatpush.msra.mxu0 %v231
        %251 = vmatpush.msra.mxu0 %v230
        %252 = vmatpush.msra.mxu0 %v229
        %253 = vmatpush.msra.mxu0 %v228
        %254 = vmatpush.msra.mxu0 %v227
        %255 = vmatpush.msra.mxu0 %v226
        %256 = vmatpush.msra.mxu0 %v225
        %257 = vmatpush.msra.mxu0 %v224
        %258 = vmatpush.msra.mxu0 %v223
        %259 = vmatpush.msra.mxu0 %v222
        %260 = vmatpush.msra.mxu0 %v221
        %261 = vmatpush.msra.mxu0 %v220
        %262 = vmatpush.msra.mxu0 %v219
        %263 = vmatpush.msra.mxu0 %v218
        %264 = vmatpush.msra.mxu0 %v217
        %265 = vmatmul.f32.gmra.mxu0 %v173
        %v266 = vpop.f32.mrf.mxu0
        %v267 = vadd.f32 0.0, %v266
        %268 = vmatmul.f32.gmra.mxu0 %v175
        %v269 = vpop.f32.mrf.mxu0
        %v270 = vadd.f32 0.0, %v269
        %271 = vmatmul.f32.gmra.mxu0 %v177
        %v272 = vpop.f32.mrf.mxu0
        %v273 = vadd.f32 0.0, %v272
        %274 = vmatmul.f32.gmra.mxu0 %v179
        %v275 = vpop.f32.mrf.mxu0
        %v276 = vadd.f32 0.0, %v275
        %277 = vmatmul.f32.gmra.mxu0 %v181
        %v278 = vpop.f32.mrf.mxu0
        %v279 = vadd.f32 0.0, %v278
        %280 = vmatmul.f32.gmra.mxu0 %v183
        %v281 = vpop.f32.mrf.mxu0
        %v282 = vadd.f32 0.0, %v281
        %283 = vdwg.mxu0
        %284 = vmatpush.msra.mxu0 %v248
        %285 = vmatpush.msra.mxu0 %v247
        %286 = vmatpush.msra.mxu0 %v246
        %287 = vmatpush.msra.mxu0 %v245
        %288 = vmatpush.msra.mxu0 %v244
        %289 = vmatpush.msra.mxu0 %v243
        %290 = vmatpush.msra.mxu0 %v242
        %291 = vmatpush.msra.mxu0 %v241
        %292 = vmatpush.msra.mxu0 %v240
        %293 = vmatpush.msra.mxu0 %v239
        %294 = vmatpush.msra.mxu0 %v238
        %295 = vmatpush.msra.mxu0 %v237
        %296 = vmatpush.msra.mxu0 %v236
        %297 = vmatpush.msra.mxu0 %v235
        %298 = vmatpush.msra.mxu0 %v234
        %299 = vmatpush.msra.mxu0 %v233
        %300 = vmatmul.f32.gmra.mxu0 %v174
        %v301 = vpop.f32.mrf.mxu0
        %v302 = vadd.f32 %v267, %v301
        %303 = vmatmul.f32.gmra.mxu0 %v176
        %v304 = vpop.f32.mrf.mxu0
        %v305 = vadd.f32 %v270, %v304
        %306 = vmatmul.f32.gmra.mxu0 %v178
        %v307 = vpop.f32.mrf.mxu0
        %v308 = vadd.f32 %v273, %v307
        %309 = vmatmul.f32.gmra.mxu0 %v180
        %v310 = vpop.f32.mrf.mxu0
        %v311 = vadd.f32 %v276, %v310
        %312 = vmatmul.f32.gmra.mxu0 %v182
        %v313 = vpop.f32.mrf.mxu0
        %v314 = vadd.f32 %v279, %v313
        %315 = vmatmul.f32.gmra.mxu0 %v184
        %v316 = vpop.f32.mrf.mxu0
        %v317 = vadd.f32 %v282, %v316
        %318 = vdwg.mxu0
        %vm319 = vcmask 523264
        %320 = vst.msk [vmem:[%s158] sm:$0xff] %vm319, %v302
        %321 = vst.msk [vmem:[%s158 + $0x8] sm:$0xff] %vm319, %v305
        %322 = vst.msk [vmem:[%s158 + $0x10] sm:$0xff] %vm319, %v308
        %323 = vst.msk [vmem:[%s158 + $0x18] sm:$0xff] %vm319, %v311
        %324 = vst.msk [vmem:[%s158 + $0x20] sm:$0xff] %vm319, %v314
        %325 = vst.msk [vmem:[%s158 + $0x28] sm:$0xff] %vm319, %v317
        %s326 = sand.u32 %s87, 1
        %s327 = scalar_lea.sflag [#allocation3], %s326
        %s328 = sand.u32 %s87, 1
        %s329 = smul.addr %s328, 48
        %s330 = scalar_lea.vmem [#allocation2], %s329
        // Predicated region
        $region29: #{tpu_custom_call.1} parent=27 // pred_check
          %p331 = pneg %p97
        $region30: #{tpu_custom_call.1} parent=27 // pred_check_branch
          %333 = sbr.rel (%p331) target = $region32
        $region31: #{tpu_custom_call.1} parent=27 // pred_region
          %335 = vsyncadd %s327, 0
          %s336 = smul.addr %s20, 6
          %s337 = sadd.s32 %s21, %s336
          %s338 = smul.addr %s337, 8
          %s339 = scalar_lea.hbm %s2, %s338
          %s340 = sshll.u32 %s330, 4
          %s341 = int_to_ptr.vmem [resolvable:$true] %s340
          %s342 = sshll.u32 %s339, 4
          %s343 = int_to_ptr.hbm [resolvable:$true] %s342
          %348 = dma.vmem_to_hbm [thread:$0]  %s341, 768, %s343, %s327, 128, 128, 8
        $region32: #{tpu_custom_call.1} parent=27 // pred_fallthru
          _
      $region28: #{tpu_custom_call.1} parent=5 // pred_fallthru
        _
      %p349 = scmp.le.s32.totalorder 2, %s11
      // Predicated region
      $region33: #{tpu_custom_call.1} parent=5 // pred_check
        %p350 = pneg %p349
      $region34: #{tpu_custom_call.1} parent=5 // pred_check_branch
        %352 = sbr.rel (%p350) target = $region36
      $region35: #{tpu_custom_call.1} parent=5 // pred_region
        %s353 = ssub.s32 %s11, 2
        // Predicated region
        $region37: #{tpu_custom_call.1} parent=35 // pred_check
          %p354 = pneg %p103
        $region38: #{tpu_custom_call.1} parent=35 // pred_check_branch
          %356 = sbr.rel (%p354) target = $region40
        $region39: #{tpu_custom_call.1} parent=35 // pred_region
          %s357 = sand.u32 %s88, 1
          %s358 = scalar_lea.sflag [#allocation3], %s357
          %s359 = sand.u32 %s88, 1
          %s360 = smul.addr %s359, 48
          %s361 = scalar_lea.vmem [#allocation2], %s360
          %363 = dma.done %s358, 768
        $region40: #{tpu_custom_call.1} parent=35 // pred_fallthru
          _
      $region36: #{tpu_custom_call.1} parent=5 // pred_fallthru
        _
    $region6: #{tpu_custom_call.1} parent=1 // loop_footer
      %s15 = sadd.s32 1, %s11
    $region7: #{tpu_custom_call.1} parent=1 // loop_footer_branch
      %10 = sbr.rel target = $region3
    $region8: #{tpu_custom_call.1} parent=1 // loop_exit
      _
    %364 = vsyncpa [#allocation3], 1
    %s365 = scalar_lea.sflag [#allocation3], 1
    %366 = vsyncpa %s365, 1

</llo_original>
